<compile_context>
chip_gen: v5e
topology: v5e:2x2
jax: 0.10.0
libtpu: 0.0.40
codegen_flags: <defaults>
</compile_context>

<pallas_src>
import jax
import jax.numpy as jnp
from jax import lax
from jax.experimental import pallas as pl
from jax.experimental.pallas import tpu as pltpu

INPUT_SIZE = 14
HIDDEN_SIZE = 8
OUTPUT_SIZE = 15
PAD = 128  # lane width: keep K and N lane-dense for the MXU / unmasked stores

# Lane layout of the fused 128-wide "combined / output" slab:
#   [0, I)        : input features x_t
#   [I, I+H)      : hidden state (both an input and an output of the GEMM)
#   [I+H, I+H+O)  : logits / log-softmax
#   [I+H+O, 128)  : zero padding
_HID_LO = INPUT_SIZE
_HID_HI = INPUT_SIZE + HIDDEN_SIZE
_OUT_LO = _HID_HI
_OUT_HI = _HID_HI + OUTPUT_SIZE


def rnn_seq_kernel(x_ref, h0_ref, w_ref, b_ref, out_ref):
    """Entire sequence in one invocation.

    x_ref  : (T, B, 128)   inputs, lanes [0, I) real, rest zero
    h0_ref : (B, 128)      initial hidden, lanes [I, I+H) real, rest zero
    w_ref  : (128, 128)    fused weight (i2h + i2o, zero padded)
    b_ref  : (1, 128)      fused bias (zero padded)
    out_ref: (T*B, 128)    row t*B+b: hidden in [I,I+H), log-probs in
                           [I+H,I+H+O), zeros elsewhere
    """
    T = x_ref.shape[0]
    B = h0_ref.shape[0]

    # Hoisted once for the whole sequence (not re-emitted per step).
    col = lax.broadcasted_iota(jnp.int32, (B, PAD), 1)
    is_hid = (col >= _HID_LO) & (col < _HID_HI)
    is_logit = (col >= _OUT_LO) & (col < _OUT_HI)
    neg_inf = jnp.float32(-jnp.inf)

    w = w_ref[...]
    b = b_ref[...]

    h = h0_ref[...]  # nonzero only in hidden lanes [I, I+H)
    outs = []
    for t in range(T):  # static unroll: T is small and known at trace time
        # "concat" == add: x nonzero in [0,I), h nonzero in [I,I+H).
        combined = x_ref[t] + h                      # (B, 128)
        # Single fused GEMM produces new hidden AND logits in one MXU pass.
        y = jnp.dot(combined, w, preferred_element_type=jnp.float32) + b
        h = jnp.where(is_hid, y, 0.0)                # carry; pad lanes stay 0

        # Numerically stable log-softmax over the O live logit lanes (f32).
        logits = jnp.where(is_logit, y, neg_inf)
        m = jnp.max(logits, axis=-1, keepdims=True)
        shifted = logits - m
        lse = jnp.log(jnp.sum(jnp.exp(shifted), axis=-1, keepdims=True))
        logsm = shifted - lse

        # Packed row: hidden, log-probs, zeros (no -inf ever stored).
        outs.append(jnp.where(is_hid, y, jnp.where(is_logit, logsm, 0.0)))

    # One lane/sublane-dense (T*B, 128) store for the whole sequence.
    out_ref[...] = jnp.concatenate(outs, axis=0)


def _pack_params(wh, bh, wo, bo):
    """Fuse i2h and i2o into one padded (128,128) weight + (1,128) bias."""
    I = INPUT_SIZE
    w = jnp.zeros((PAD, PAD), jnp.float32)
    # rows [0, I): input part; rows [I, I+H): hidden part (matches lane layout
    # of `combined`, so the recurrence needs no repacking between steps).
    w = w.at[:I, _HID_LO:_HID_HI].set(wh[:I])
    w = w.at[:I, _OUT_LO:_OUT_HI].set(wo[:I])
    w = w.at[_HID_LO:_HID_HI, _HID_LO:_HID_HI].set(wh[I:])
    w = w.at[_HID_LO:_HID_HI, _OUT_LO:_OUT_HI].set(wo[I:])
    bias = jnp.zeros((1, PAD), jnp.float32)
    bias = bias.at[:, _HID_LO:_HID_HI].set(bh)
    bias = bias.at[:, _OUT_LO:_OUT_HI].set(bo)
    return w, bias


def rnn_forward_sequence(x_seq, h0, wh, bh, wo, bo):
    """Run T RNN steps in one fused pallas_call.

    x_seq: (T, B, I)   h0: (B, H)
    wh: (I+H, H), bh: (1, H), wo: (I+H, O), bo: (1, O)   (x @ W + b layout)
    Returns (log_probs (T, B, O), hiddens (T, B, H)).
    """
    T, B, I = x_seq.shape
    O = OUTPUT_SIZE

    w, bias = _pack_params(wh, bh, wo, bo)
    x_pad = jnp.zeros((T, B, PAD), jnp.float32).at[:, :, :I].set(x_seq)
    h0_pad = jnp.zeros((B, PAD), jnp.float32).at[:, _HID_LO:_HID_HI].set(h0)

    cost = pl.CostEstimate(
        flops=T * B * 2 * PAD * PAD,                 # one (B,128)x(128,128) dot/step
        transcendentals=T * B * (O + 1),             # live exp lanes + one log / row
        bytes_accessed=4 * (x_pad.size + h0_pad.size + w.size + bias.size
                            + T * B * PAD),
    )

    slab = pl.pallas_call(
        rnn_seq_kernel,
        out_shape=jax.ShapeDtypeStruct((T * B, PAD), jnp.float32),
        grid_spec=pltpu.PrefetchScalarGridSpec(
            num_scalar_prefetch=0,
            grid=(1,),                               # whole sequence = one step
            in_specs=[
                pl.BlockSpec((T, B, PAD), lambda i: (0, 0, 0)),  # x, one DMA
                pl.BlockSpec((B, PAD), lambda i: (0, 0)),        # h0
                pl.BlockSpec((PAD, PAD), lambda i: (0, 0)),      # fused W
                pl.BlockSpec((1, PAD), lambda i: (0, 0)),        # fused bias
            ],
            out_specs=pl.BlockSpec((T * B, PAD), lambda i: (0, 0)),
        ),
        compiler_params=pltpu.CompilerParams(
            dimension_semantics=("arbitrary",),      # recurrence => sequential
        ),
        cost_estimate=cost,
    )(x_pad, h0_pad, w, bias)

    slab = slab.reshape(T, B, PAD)
    hiddens = slab[:, :, _HID_LO:_HID_HI]
    log_probs = slab[:, :, _OUT_LO:_OUT_HI]
    return log_probs, hiddens


def rnn_forward(inp, hidden, wh, bh, wo, bo):
    """Single-step API matching the PyTorch forward: returns (output, hidden)."""
    log_probs, hiddens = rnn_forward_sequence(inp[None], hidden, wh, bh, wo, bo)
    return log_probs[0], hiddens[0]


def init_linear_params(key, in_features, out_features):
    """nn.Linear-style init; weight stored as (in, out), bias as (1, out)."""
    k_w, k_b = jax.random.split(key)
    bound = 1.0 / jnp.sqrt(float(in_features))
    w = jax.random.uniform(
        k_w, (in_features, out_features), jnp.float32, minval=-bound, maxval=bound
    )
    b = jax.random.uniform(
        k_b, (1, out_features), jnp.float32, minval=-bound, maxval=bound
    )
    return w, b


if __name__ == "__main__":
    key = jax.random.PRNGKey(0)
    k_in, k_i2h, k_i2o = jax.random.split(key, 3)

    # Parameters (synthetic, deterministic)
    wh, bh = init_linear_params(k_i2h, INPUT_SIZE + HIDDEN_SIZE, HIDDEN_SIZE)
    wo, bo = init_linear_params(k_i2o, INPUT_SIZE + HIDDEN_SIZE, OUTPUT_SIZE)

    # Inputs: batch=1 (matches rnn.initHidden()), sequence length 8
    T, B = 8, 1
    x_seq = jax.random.normal(k_in, (T, B, INPUT_SIZE), jnp.float32)
    hidden0 = jnp.zeros((B, HIDDEN_SIZE), jnp.float32)

    log_probs, hiddens = rnn_forward_sequence(x_seq, hidden0, wh, bh, wo, bo)
    jax.block_until_ready((log_probs, hiddens))

    # Reference: plain-JAX step-by-step loop mirroring the PyTorch forward.
    ref_outs, ref_hids = [], []
    h = hidden0
    for t in range(T):
        combined = jnp.concatenate([x_seq[t], h], axis=1)
        h = combined @ wh + bh
        logits = combined @ wo + bo
        ref_outs.append(jax.nn.log_softmax(logits, axis=1))
        ref_hids.append(h)
    ref_outs = jnp.stack(ref_outs)
    ref_hids = jnp.stack(ref_hids)

    assert jnp.all(jnp.isfinite(log_probs)), "non-finite log-probs"
    assert jnp.allclose(log_probs, ref_outs, atol=1e-5), "log-softmax output mismatch"
    assert jnp.allclose(hiddens, ref_hids, atol=1e-5), "hidden state mismatch"

    # Also exercise the single-step API (exact PyTorch forward semantics).
    out1, h1 = rnn_forward(x_seq[0], hidden0, wh, bh, wo, bo)
    jax.block_until_ready((out1, h1))
    assert jnp.allclose(out1, ref_outs[0], atol=1e-5)
    assert jnp.allclose(h1, ref_hids[0], atol=1e-5)

    print("KERNEL_OK")
</pallas_src>

<mosaic_0001>
module attributes {stable_mosaic.version = 11 : i64} {
  func.func @rnn_seq_kernel(%arg0: i32, %arg1: memref<8x1x128xf32, #tpu.memory_space<vmem>>, %arg2: memref<1x128xf32, #tpu.memory_space<vmem>>, %arg3: memref<128x128xf32, #tpu.memory_space<vmem>>, %arg4: memref<1x128xf32, #tpu.memory_space<vmem>>, %arg5: memref<8x128xf32, #tpu.memory_space<vmem>>) attributes {dimension_semantics = [#tpu.dimension_semantics<arbitrary>], iteration_bounds = array<i64: 1>, scalar_prefetch = 0 : i64, scratch_operands = 0 : i64, tpu.core_type = #tpu.core_type<tc>, window_params = [{pipeline_mode = #tpu.pipeline_mode<synchronous>, transform_indices = @transform_0, window_bounds = array<i64: 8, 1, 128>}, {pipeline_mode = #tpu.pipeline_mode<synchronous>, transform_indices = @transform_1, window_bounds = array<i64: 1, 128>}, {pipeline_mode = #tpu.pipeline_mode<synchronous>, transform_indices = @transform_2, window_bounds = array<i64: 128, 128>}, {pipeline_mode = #tpu.pipeline_mode<synchronous>, transform_indices = @transform_3, window_bounds = array<i64: 1, 128>}, {pipeline_mode = #tpu.pipeline_mode<synchronous>, transform_indices = @transform_4, window_bounds = array<i64: 8, 128>}]} {
    %0 = tpu.iota {dimensions = array<i32: 1>} : vector<1x128xi32>
    %c14_i32 = arith.constant 14 : i32
    %1 = vector.broadcast %c14_i32 : i32 to vector<1x128xi32>
    %2 = arith.cmpi sge, %0, %1 : vector<1x128xi32>
    %c22_i32 = arith.constant 22 : i32
    %3 = vector.broadcast %c22_i32 : i32 to vector<1x128xi32>
    %4 = arith.cmpi slt, %0, %3 : vector<1x128xi32>
    %5 = arith.andi %2, %4 : vector<1x128xi1>
    %c22_i32_0 = arith.constant 22 : i32
    %6 = vector.broadcast %c22_i32_0 : i32 to vector<1x128xi32>
    %7 = arith.cmpi sge, %0, %6 : vector<1x128xi32>
    %c37_i32 = arith.constant 37 : i32
    %8 = vector.broadcast %c37_i32 : i32 to vector<1x128xi32>
    %9 = arith.cmpi slt, %0, %8 : vector<1x128xi32>
    %10 = arith.andi %7, %9 : vector<1x128xi1>
    %c0 = arith.constant 0 : index
    %c0_1 = arith.constant 0 : index
    %11 = vector.load %arg3[%c0, %c0_1] : memref<128x128xf32, #tpu.memory_space<vmem>>, vector<128x128xf32>
    %c0_2 = arith.constant 0 : index
    %c0_3 = arith.constant 0 : index
    %12 = vector.load %arg4[%c0_2, %c0_3] : memref<1x128xf32, #tpu.memory_space<vmem>>, vector<1x128xf32>
    %c0_4 = arith.constant 0 : index
    %c0_5 = arith.constant 0 : index
    %13 = vector.load %arg2[%c0_4, %c0_5] : memref<1x128xf32, #tpu.memory_space<vmem>>, vector<1x128xf32>
    %c0_6 = arith.constant 0 : index
    %c0_7 = arith.constant 0 : index
    %c0_8 = arith.constant 0 : index
    %14 = vector.load %arg1[%c0_6, %c0_7, %c0_8] : memref<8x1x128xf32, #tpu.memory_space<vmem>>, vector<1x1x128xf32>
    %15 = vector.shape_cast %14 : vector<1x1x128xf32> to vector<1x128xf32>
    %16 = arith.addf %15, %13 : vector<1x128xf32>
    %cst = arith.constant dense<0.000000e+00> : vector<1x128xf32>
    %17 = tpu.matmul %16, %11, %cst {dimension_numbers = #tpu.dot_dimension_numbers<[1], [0], [0], [1], [0, 0, 1, 1], [], []>} : vector<1x128xf32>, vector<128x128xf32>, vector<1x128xf32> -> vector<1x128xf32>
    %18 = arith.addf %17, %12 : vector<1x128xf32>
    %cst_9 = arith.constant 0.000000e+00 : f32
    %19 = vector.broadcast %cst_9 : f32 to vector<1x128xf32>
    %20 = arith.select %5, %18, %19 : vector<1x128xi1>, vector<1x128xf32>
    %cst_10 = arith.constant 0xFF800000 : f32
    %21 = vector.broadcast %cst_10 : f32 to vector<1x128xf32>
    %22 = arith.select %10, %18, %21 : vector<1x128xi1>, vector<1x128xf32>
    %cst_11 = arith.constant dense<0xFF800000> : vector<1xf32>
    %23 = vector.multi_reduction <maximumf>, %22, %cst_11 [1] : vector<1x128xf32> to vector<1xf32>
    %24 = vector.shape_cast %23 : vector<1xf32> to vector<1x1xf32>
    %25 = vector.broadcast %24 : vector<1x1xf32> to vector<1x128xf32>
    %26 = arith.subf %22, %25 : vector<1x128xf32>
    %27 = math.exp %26 : vector<1x128xf32>
    %cst_12 = arith.constant dense<0.000000e+00> : vector<1xf32>
    %28 = vector.multi_reduction <add>, %27, %cst_12 [1] : vector<1x128xf32> to vector<1xf32>
    %29 = vector.shape_cast %28 : vector<1xf32> to vector<1x1xf32>
    %30 = math.log %29 : vector<1x1xf32>
    %31 = vector.broadcast %30 : vector<1x1xf32> to vector<1x128xf32>
    %32 = arith.subf %26, %31 : vector<1x128xf32>
    %cst_13 = arith.constant 0.000000e+00 : f32
    %33 = vector.broadcast %cst_13 : f32 to vector<1x128xf32>
    %34 = arith.select %10, %32, %33 : vector<1x128xi1>, vector<1x128xf32>
    %35 = arith.select %5, %18, %34 : vector<1x128xi1>, vector<1x128xf32>
    %c1 = arith.constant 1 : index
    %c0_14 = arith.constant 0 : index
    %c0_15 = arith.constant 0 : index
    %36 = vector.load %arg1[%c1, %c0_14, %c0_15] : memref<8x1x128xf32, #tpu.memory_space<vmem>>, vector<1x1x128xf32>
    %37 = vector.shape_cast %36 : vector<1x1x128xf32> to vector<1x128xf32>
    %38 = arith.addf %37, %20 : vector<1x128xf32>
    %cst_16 = arith.constant dense<0.000000e+00> : vector<1x128xf32>
    %39 = tpu.matmul %38, %11, %cst_16 {dimension_numbers = #tpu.dot_dimension_numbers<[1], [0], [0], [1], [0, 0, 1, 1], [], []>} : vector<1x128xf32>, vector<128x128xf32>, vector<1x128xf32> -> vector<1x128xf32>
    %40 = arith.addf %39, %12 : vector<1x128xf32>
    %cst_17 = arith.constant 0.000000e+00 : f32
    %41 = vector.broadcast %cst_17 : f32 to vector<1x128xf32>
    %42 = arith.select %5, %40, %41 : vector<1x128xi1>, vector<1x128xf32>
    %cst_18 = arith.constant 0xFF800000 : f32
    %43 = vector.broadcast %cst_18 : f32 to vector<1x128xf32>
    %44 = arith.select %10, %40, %43 : vector<1x128xi1>, vector<1x128xf32>
    %cst_19 = arith.constant dense<0xFF800000> : vector<1xf32>
    %45 = vector.multi_reduction <maximumf>, %44, %cst_19 [1] : vector<1x128xf32> to vector<1xf32>
    %46 = vector.shape_cast %45 : vector<1xf32> to vector<1x1xf32>
    %47 = vector.broadcast %46 : vector<1x1xf32> to vector<1x128xf32>
    %48 = arith.subf %44, %47 : vector<1x128xf32>
    %49 = math.exp %48 : vector<1x128xf32>
    %cst_20 = arith.constant dense<0.000000e+00> : vector<1xf32>
    %50 = vector.multi_reduction <add>, %49, %cst_20 [1] : vector<1x128xf32> to vector<1xf32>
    %51 = vector.shape_cast %50 : vector<1xf32> to vector<1x1xf32>
    %52 = math.log %51 : vector<1x1xf32>
    %53 = vector.broadcast %52 : vector<1x1xf32> to vector<1x128xf32>
    %54 = arith.subf %48, %53 : vector<1x128xf32>
    %cst_21 = arith.constant 0.000000e+00 : f32
    %55 = vector.broadcast %cst_21 : f32 to vector<1x128xf32>
    %56 = arith.select %10, %54, %55 : vector<1x128xi1>, vector<1x128xf32>
    %57 = arith.select %5, %40, %56 : vector<1x128xi1>, vector<1x128xf32>
    %c2 = arith.constant 2 : index
    %c0_22 = arith.constant 0 : index
    %c0_23 = arith.constant 0 : index
    %58 = vector.load %arg1[%c2, %c0_22, %c0_23] : memref<8x1x128xf32, #tpu.memory_space<vmem>>, vector<1x1x128xf32>
    %59 = vector.shape_cast %58 : vector<1x1x128xf32> to vector<1x128xf32>
    %60 = arith.addf %59, %42 : vector<1x128xf32>
    %cst_24 = arith.constant dense<0.000000e+00> : vector<1x128xf32>
    %61 = tpu.matmul %60, %11, %cst_24 {dimension_numbers = #tpu.dot_dimension_numbers<[1], [0], [0], [1], [0, 0, 1, 1], [], []>} : vector<1x128xf32>, vector<128x128xf32>, vector<1x128xf32> -> vector<1x128xf32>
    %62 = arith.addf %61, %12 : vector<1x128xf32>
    %cst_25 = arith.constant 0.000000e+00 : f32
    %63 = vector.broadcast %cst_25 : f32 to vector<1x128xf32>
    %64 = arith.select %5, %62, %63 : vector<1x128xi1>, vector<1x128xf32>
    %cst_26 = arith.constant 0xFF800000 : f32
    %65 = vector.broadcast %cst_26 : f32 to vector<1x128xf32>
    %66 = arith.select %10, %62, %65 : vector<1x128xi1>, vector<1x128xf32>
    %cst_27 = arith.constant dense<0xFF800000> : vector<1xf32>
    %67 = vector.multi_reduction <maximumf>, %66, %cst_27 [1] : vector<1x128xf32> to vector<1xf32>
    %68 = vector.shape_cast %67 : vector<1xf32> to vector<1x1xf32>
    %69 = vector.broadcast %68 : vector<1x1xf32> to vector<1x128xf32>
    %70 = arith.subf %66, %69 : vector<1x128xf32>
    %71 = math.exp %70 : vector<1x128xf32>
    %cst_28 = arith.constant dense<0.000000e+00> : vector<1xf32>
    %72 = vector.multi_reduction <add>, %71, %cst_28 [1] : vector<1x128xf32> to vector<1xf32>
    %73 = vector.shape_cast %72 : vector<1xf32> to vector<1x1xf32>
    %74 = math.log %73 : vector<1x1xf32>
    %75 = vector.broadcast %74 : vector<1x1xf32> to vector<1x128xf32>
    %76 = arith.subf %70, %75 : vector<1x128xf32>
    %cst_29 = arith.constant 0.000000e+00 : f32
    %77 = vector.broadcast %cst_29 : f32 to vector<1x128xf32>
    %78 = arith.select %10, %76, %77 : vector<1x128xi1>, vector<1x128xf32>
    %79 = arith.select %5, %62, %78 : vector<1x128xi1>, vector<1x128xf32>
    %c3 = arith.constant 3 : index
    %c0_30 = arith.constant 0 : index
    %c0_31 = arith.constant 0 : index
    %80 = vector.load %arg1[%c3, %c0_30, %c0_31] : memref<8x1x128xf32, #tpu.memory_space<vmem>>, vector<1x1x128xf32>
    %81 = vector.shape_cast %80 : vector<1x1x128xf32> to vector<1x128xf32>
    %82 = arith.addf %81, %64 : vector<1x128xf32>
    %cst_32 = arith.constant dense<0.000000e+00> : vector<1x128xf32>
    %83 = tpu.matmul %82, %11, %cst_32 {dimension_numbers = #tpu.dot_dimension_numbers<[1], [0], [0], [1], [0, 0, 1, 1], [], []>} : vector<1x128xf32>, vector<128x128xf32>, vector<1x128xf32> -> vector<1x128xf32>
    %84 = arith.addf %83, %12 : vector<1x128xf32>
    %cst_33 = arith.constant 0.000000e+00 : f32
    %85 = vector.broadcast %cst_33 : f32 to vector<1x128xf32>
    %86 = arith.select %5, %84, %85 : vector<1x128xi1>, vector<1x128xf32>
    %cst_34 = arith.constant 0xFF800000 : f32
    %87 = vector.broadcast %cst_34 : f32 to vector<1x128xf32>
    %88 = arith.select %10, %84, %87 : vector<1x128xi1>, vector<1x128xf32>
    %cst_35 = arith.constant dense<0xFF800000> : vector<1xf32>
    %89 = vector.multi_reduction <maximumf>, %88, %cst_35 [1] : vector<1x128xf32> to vector<1xf32>
    %90 = vector.shape_cast %89 : vector<1xf32> to vector<1x1xf32>
    %91 = vector.broadcast %90 : vector<1x1xf32> to vector<1x128xf32>
    %92 = arith.subf %88, %91 : vector<1x128xf32>
    %93 = math.exp %92 : vector<1x128xf32>
    %cst_36 = arith.constant dense<0.000000e+00> : vector<1xf32>
    %94 = vector.multi_reduction <add>, %93, %cst_36 [1] : vector<1x128xf32> to vector<1xf32>
    %95 = vector.shape_cast %94 : vector<1xf32> to vector<1x1xf32>
    %96 = math.log %95 : vector<1x1xf32>
    %97 = vector.broadcast %96 : vector<1x1xf32> to vector<1x128xf32>
    %98 = arith.subf %92, %97 : vector<1x128xf32>
    %cst_37 = arith.constant 0.000000e+00 : f32
    %99 = vector.broadcast %cst_37 : f32 to vector<1x128xf32>
    %100 = arith.select %10, %98, %99 : vector<1x128xi1>, vector<1x128xf32>
    %101 = arith.select %5, %84, %100 : vector<1x128xi1>, vector<1x128xf32>
    %c4 = arith.constant 4 : index
    %c0_38 = arith.constant 0 : index
    %c0_39 = arith.constant 0 : index
    %102 = vector.load %arg1[%c4, %c0_38, %c0_39] : memref<8x1x128xf32, #tpu.memory_space<vmem>>, vector<1x1x128xf32>
    %103 = vector.shape_cast %102 : vector<1x1x128xf32> to vector<1x128xf32>
    %104 = arith.addf %103, %86 : vector<1x128xf32>
    %cst_40 = arith.constant dense<0.000000e+00> : vector<1x128xf32>
    %105 = tpu.matmul %104, %11, %cst_40 {dimension_numbers = #tpu.dot_dimension_numbers<[1], [0], [0], [1], [0, 0, 1, 1], [], []>} : vector<1x128xf32>, vector<128x128xf32>, vector<1x128xf32> -> vector<1x128xf32>
    %106 = arith.addf %105, %12 : vector<1x128xf32>
    %cst_41 = arith.constant 0.000000e+00 : f32
    %107 = vector.broadcast %cst_41 : f32 to vector<1x128xf32>
    %108 = arith.select %5, %106, %107 : vector<1x128xi1>, vector<1x128xf32>
    %cst_42 = arith.constant 0xFF800000 : f32
    %109 = vector.broadcast %cst_42 : f32 to vector<1x128xf32>
    %110 = arith.select %10, %106, %109 : vector<1x128xi1>, vector<1x128xf32>
    %cst_43 = arith.constant dense<0xFF800000> : vector<1xf32>
    %111 = vector.multi_reduction <maximumf>, %110, %cst_43 [1] : vector<1x128xf32> to vector<1xf32>
    %112 = vector.shape_cast %111 : vector<1xf32> to vector<1x1xf32>
    %113 = vector.broadcast %112 : vector<1x1xf32> to vector<1x128xf32>
    %114 = arith.subf %110, %113 : vector<1x128xf32>
    %115 = math.exp %114 : vector<1x128xf32>
    %cst_44 = arith.constant dense<0.000000e+00> : vector<1xf32>
    %116 = vector.multi_reduction <add>, %115, %cst_44 [1] : vector<1x128xf32> to vector<1xf32>
    %117 = vector.shape_cast %116 : vector<1xf32> to vector<1x1xf32>
    %118 = math.log %117 : vector<1x1xf32>
    %119 = vector.broadcast %118 : vector<1x1xf32> to vector<1x128xf32>
    %120 = arith.subf %114, %119 : vector<1x128xf32>
    %cst_45 = arith.constant 0.000000e+00 : f32
    %121 = vector.broadcast %cst_45 : f32 to vector<1x128xf32>
    %122 = arith.select %10, %120, %121 : vector<1x128xi1>, vector<1x128xf32>
    %123 = arith.select %5, %106, %122 : vector<1x128xi1>, vector<1x128xf32>
    %c5 = arith.constant 5 : index
    %c0_46 = arith.constant 0 : index
    %c0_47 = arith.constant 0 : index
    %124 = vector.load %arg1[%c5, %c0_46, %c0_47] : memref<8x1x128xf32, #tpu.memory_space<vmem>>, vector<1x1x128xf32>
    %125 = vector.shape_cast %124 : vector<1x1x128xf32> to vector<1x128xf32>
    %126 = arith.addf %125, %108 : vector<1x128xf32>
    %cst_48 = arith.constant dense<0.000000e+00> : vector<1x128xf32>
    %127 = tpu.matmul %126, %11, %cst_48 {dimension_numbers = #tpu.dot_dimension_numbers<[1], [0], [0], [1], [0, 0, 1, 1], [], []>} : vector<1x128xf32>, vector<128x128xf32>, vector<1x128xf32> -> vector<1x128xf32>
    %128 = arith.addf %127, %12 : vector<1x128xf32>
    %cst_49 = arith.constant 0.000000e+00 : f32
    %129 = vector.broadcast %cst_49 : f32 to vector<1x128xf32>
    %130 = arith.select %5, %128, %129 : vector<1x128xi1>, vector<1x128xf32>
    %cst_50 = arith.constant 0xFF800000 : f32
    %131 = vector.broadcast %cst_50 : f32 to vector<1x128xf32>
    %132 = arith.select %10, %128, %131 : vector<1x128xi1>, vector<1x128xf32>
    %cst_51 = arith.constant dense<0xFF800000> : vector<1xf32>
    %133 = vector.multi_reduction <maximumf>, %132, %cst_51 [1] : vector<1x128xf32> to vector<1xf32>
    %134 = vector.shape_cast %133 : vector<1xf32> to vector<1x1xf32>
    %135 = vector.broadcast %134 : vector<1x1xf32> to vector<1x128xf32>
    %136 = arith.subf %132, %135 : vector<1x128xf32>
    %137 = math.exp %136 : vector<1x128xf32>
    %cst_52 = arith.constant dense<0.000000e+00> : vector<1xf32>
    %138 = vector.multi_reduction <add>, %137, %cst_52 [1] : vector<1x128xf32> to vector<1xf32>
    %139 = vector.shape_cast %138 : vector<1xf32> to vector<1x1xf32>
    %140 = math.log %139 : vector<1x1xf32>
    %141 = vector.broadcast %140 : vector<1x1xf32> to vector<1x128xf32>
    %142 = arith.subf %136, %141 : vector<1x128xf32>
    %cst_53 = arith.constant 0.000000e+00 : f32
    %143 = vector.broadcast %cst_53 : f32 to vector<1x128xf32>
    %144 = arith.select %10, %142, %143 : vector<1x128xi1>, vector<1x128xf32>
    %145 = arith.select %5, %128, %144 : vector<1x128xi1>, vector<1x128xf32>
    %c6 = arith.constant 6 : index
    %c0_54 = arith.constant 0 : index
    %c0_55 = arith.constant 0 : index
    %146 = vector.load %arg1[%c6, %c0_54, %c0_55] : memref<8x1x128xf32, #tpu.memory_space<vmem>>, vector<1x1x128xf32>
    %147 = vector.shape_cast %146 : vector<1x1x128xf32> to vector<1x128xf32>
    %148 = arith.addf %147, %130 : vector<1x128xf32>
    %cst_56 = arith.constant dense<0.000000e+00> : vector<1x128xf32>
    %149 = tpu.matmul %148, %11, %cst_56 {dimension_numbers = #tpu.dot_dimension_numbers<[1], [0], [0], [1], [0, 0, 1, 1], [], []>} : vector<1x128xf32>, vector<128x128xf32>, vector<1x128xf32> -> vector<1x128xf32>
    %150 = arith.addf %149, %12 : vector<1x128xf32>
    %cst_57 = arith.constant 0.000000e+00 : f32
    %151 = vector.broadcast %cst_57 : f32 to vector<1x128xf32>
    %152 = arith.select %5, %150, %151 : vector<1x128xi1>, vector<1x128xf32>
    %cst_58 = arith.constant 0xFF800000 : f32
    %153 = vector.broadcast %cst_58 : f32 to vector<1x128xf32>
    %154 = arith.select %10, %150, %153 : vector<1x128xi1>, vector<1x128xf32>
    %cst_59 = arith.constant dense<0xFF800000> : vector<1xf32>
    %155 = vector.multi_reduction <maximumf>, %154, %cst_59 [1] : vector<1x128xf32> to vector<1xf32>
    %156 = vector.shape_cast %155 : vector<1xf32> to vector<1x1xf32>
    %157 = vector.broadcast %156 : vector<1x1xf32> to vector<1x128xf32>
    %158 = arith.subf %154, %157 : vector<1x128xf32>
    %159 = math.exp %158 : vector<1x128xf32>
    %cst_60 = arith.constant dense<0.000000e+00> : vector<1xf32>
    %160 = vector.multi_reduction <add>, %159, %cst_60 [1] : vector<1x128xf32> to vector<1xf32>
    %161 = vector.shape_cast %160 : vector<1xf32> to vector<1x1xf32>
    %162 = math.log %161 : vector<1x1xf32>
    %163 = vector.broadcast %162 : vector<1x1xf32> to vector<1x128xf32>
    %164 = arith.subf %158, %163 : vector<1x128xf32>
    %cst_61 = arith.constant 0.000000e+00 : f32
    %165 = vector.broadcast %cst_61 : f32 to vector<1x128xf32>
    %166 = arith.select %10, %164, %165 : vector<1x128xi1>, vector<1x128xf32>
    %167 = arith.select %5, %150, %166 : vector<1x128xi1>, vector<1x128xf32>
    %c7 = arith.constant 7 : index
    %c0_62 = arith.constant 0 : index
    %c0_63 = arith.constant 0 : index
    %168 = vector.load %arg1[%c7, %c0_62, %c0_63] : memref<8x1x128xf32, #tpu.memory_space<vmem>>, vector<1x1x128xf32>
    %169 = vector.shape_cast %168 : vector<1x1x128xf32> to vector<1x128xf32>
    %170 = arith.addf %169, %152 : vector<1x128xf32>
    %cst_64 = arith.constant dense<0.000000e+00> : vector<1x128xf32>
    %171 = tpu.matmul %170, %11, %cst_64 {dimension_numbers = #tpu.dot_dimension_numbers<[1], [0], [0], [1], [0, 0, 1, 1], [], []>} : vector<1x128xf32>, vector<128x128xf32>, vector<1x128xf32> -> vector<1x128xf32>
    %172 = arith.addf %171, %12 : vector<1x128xf32>
    %cst_65 = arith.constant 0xFF800000 : f32
    %173 = vector.broadcast %cst_65 : f32 to vector<1x128xf32>
    %174 = arith.select %10, %172, %173 : vector<1x128xi1>, vector<1x128xf32>
    %cst_66 = arith.constant dense<0xFF800000> : vector<1xf32>
    %175 = vector.multi_reduction <maximumf>, %174, %cst_66 [1] : vector<1x128xf32> to vector<1xf32>
    %176 = vector.shape_cast %175 : vector<1xf32> to vector<1x1xf32>
    %177 = vector.broadcast %176 : vector<1x1xf32> to vector<1x128xf32>
    %178 = arith.subf %174, %177 : vector<1x128xf32>
    %179 = math.exp %178 : vector<1x128xf32>
    %cst_67 = arith.constant dense<0.000000e+00> : vector<1xf32>
    %180 = vector.multi_reduction <add>, %179, %cst_67 [1] : vector<1x128xf32> to vector<1xf32>
    %181 = vector.shape_cast %180 : vector<1xf32> to vector<1x1xf32>
    %182 = math.log %181 : vector<1x1xf32>
    %183 = vector.broadcast %182 : vector<1x1xf32> to vector<1x128xf32>
    %184 = arith.subf %178, %183 : vector<1x128xf32>
    %cst_68 = arith.constant 0.000000e+00 : f32
    %185 = vector.broadcast %cst_68 : f32 to vector<1x128xf32>
    %186 = arith.select %10, %184, %185 : vector<1x128xi1>, vector<1x128xf32>
    %187 = arith.select %5, %172, %186 : vector<1x128xi1>, vector<1x128xf32>
    %188 = tpu.concatenate %35, %57, %79, %101, %123, %145, %167, %187 in 0 : vector<1x128xf32>, vector<1x128xf32>, vector<1x128xf32>, vector<1x128xf32>, vector<1x128xf32>, vector<1x128xf32>, vector<1x128xf32>, vector<1x128xf32> -> vector<8x128xf32>
    %c0_69 = arith.constant 0 : index
    %c0_70 = arith.constant 0 : index
    %189 = vector.load %arg5[%c0_69, %c0_70] : memref<8x128xf32, #tpu.memory_space<vmem>>, vector<8x128xf32>
    tpu.vector_store %arg5[%c0_69, %c0_70], %188 {strides = array<i32>} : memref<8x128xf32, #tpu.memory_space<vmem>>, vector<8x128xf32>,
    return
  }
  func.func @transform_0(%arg0: i32) -> (i32, i32, i32) {
    %c0_i32 = arith.constant 0 : i32
    %c0_i32_0 = arith.constant 0 : i32
    %c0_i32_1 = arith.constant 0 : i32
    %c0_i32_2 = arith.constant 0 : i32
    return %c0_i32, %c0_i32_0, %c0_i32_1 : i32, i32, i32
  }
  func.func @transform_1(%arg0: i32) -> (i32, i32) {
    %c0_i32 = arith.constant 0 : i32
    %c0_i32_0 = arith.constant 0 : i32
    %c0_i32_1 = arith.constant 0 : i32
    return %c0_i32, %c0_i32_0 : i32, i32
  }
  func.func @transform_2(%arg0: i32) -> (i32, i32) {
    %c0_i32 = arith.constant 0 : i32
    %c0_i32_0 = arith.constant 0 : i32
    %c0_i32_1 = arith.constant 0 : i32
    return %c0_i32, %c0_i32_0 : i32, i32
  }
  func.func @transform_3(%arg0: i32) -> (i32, i32) {
    %c0_i32 = arith.constant 0 : i32
    %c0_i32_0 = arith.constant 0 : i32
    %c0_i32_1 = arith.constant 0 : i32
    return %c0_i32, %c0_i32_0 : i32, i32
  }
  func.func @transform_4(%arg0: i32) -> (i32, i32) {
    %c0_i32 = arith.constant 0 : i32
    %c0_i32_0 = arith.constant 0 : i32
    %c0_i32_1 = arith.constant 0 : i32
    return %c0_i32, %c0_i32_0 : i32, i32
  }
}

</mosaic_0001>

<llo_original>
// kernel: tpu_custom_call.1
$region0: #{tpu_custom_call.1}
  #allocation0 [shape = 'u32[]', space=smem, size = 0x4, offset = 0x4, fixed_abs, tag = 'smem constant byte address 0x4 - core index']
  #allocation1 [shape = 'u32[72,128]{1,0:T(1,128)}', space=vmem, size = 0x9000, scoped, tag = 'internal scratch']
  %s0 = inlined_call_operand.hbm [shape: f32[8,1,128], index: 0, kind: input, shape index: {}]
  %s1 = inlined_call_operand.hbm [shape: f32[1,128], index: 1, kind: input, shape index: {}]
  %s2 = inlined_call_operand.hbm [shape: f32[128,128], index: 2, kind: input, shape index: {}]
  %s3 = inlined_call_operand.vmem [shape: f32[1,128], index: 3, kind: input, shape index: {}]
  %s4 = inlined_call_operand.hbm [shape: f32[8,128], index: 4, kind: output, shape index: {}]
  %s5 = sld [smem:[#allocation0]]
  $region38: #{tpu_custom_call.1} parent=0
    _
  %s7 = ssub.s32 1, %s5
  %s8 = scalar_select 0, %s7, %s5
  $region1: #{tpu_custom_call.1} parent=0
    #allocation2 [shape = 'u8[4096]{0}', space=vmem, size = 0x1000, scoped, tag = 'input window, operand 0, single buffered']
    #allocation3 [shape = 's32[1]{0}', space=sflag, size = 0x4, scoped, tag = 'scoped memory for tpu_custom_call.1']
    #allocation4 [shape = 's32[1]{0}', space=sflag, size = 0x4, scoped, tag = 'scoped memory for tpu_custom_call.1']
    #allocation5 [shape = 'u8[512]{0}', space=vmem, size = 0x400, scoped, tag = 'input window, operand 1, single buffered']
    #allocation6 [shape = 's32[1]{0}', space=sflag, size = 0x4, scoped, tag = 'scoped memory for tpu_custom_call.1']
    #allocation7 [shape = 'u8[65536]{0}', space=vmem, size = 0x10000, scoped, tag = 'input window, operand 2, single buffered']
    #allocation8 [shape = 'u8[4096]{0}', space=vmem, size = 0x1000, scoped, tag = 'output window, operand 0, single buffered']
    %9 = vsyncpa [#allocation3], 0
    %10 = vsyncpa [#allocation6], 0
    %11 = vsyncpa [#allocation4], 0
    // Predicated region
    $region2: #{tpu_custom_call.1} parent=1 // pred_check
      _
    $region3: #{tpu_custom_call.1} parent=1 // pred_check_branch
      %13 = sbr.rel (0) target = $region5
    $region4: #{tpu_custom_call.1} parent=1 // pred_region
      %15 = vsyncadd [#allocation3], 0
      %s16 = sshll.u32 %s0, 4
      %s17 = int_to_ptr.hbm [resolvable:$true] %s16
      %s18 = sshll.u32 [#allocation2], 4
      %s19 = int_to_ptr.vmem [resolvable:$true] %s18
      %24 = dma.hbm_to_vmem [thread:$0]  %s17, 128, %s19, [#allocation3], 16, 16, 1
    $region5: #{tpu_custom_call.1} parent=1 // pred_fallthru
      _
    // Predicated region
    $region6: #{tpu_custom_call.1} parent=1 // pred_check
      _
    $region7: #{tpu_custom_call.1} parent=1 // pred_check_branch
      %26 = sbr.rel (0) target = $region9
    $region8: #{tpu_custom_call.1} parent=1 // pred_region
      %28 = vsyncadd [#allocation6], 0
      %s30 = sshll.u32 %s1, 4
      %s31 = int_to_ptr.hbm [resolvable:$true] %s30
      %s32 = sshll.u32 [#allocation5], 4
      %s33 = int_to_ptr.vmem [resolvable:$true] %s32
      %35 = dma.hbm_to_vmem [thread:$0]  %s31, 16, %s33, [#allocation6]
    $region9: #{tpu_custom_call.1} parent=1 // pred_fallthru
      _
    // Predicated region
    $region10: #{tpu_custom_call.1} parent=1 // pred_check
      _
    $region11: #{tpu_custom_call.1} parent=1 // pred_check_branch
      %37 = sbr.rel (0) target = $region13
    $region12: #{tpu_custom_call.1} parent=1 // pred_region
      %39 = vsyncadd [#allocation6], 0
      %s40 = sshll.u32 %s2, 4
      %s41 = int_to_ptr.hbm [resolvable:$true] %s40
      %s42 = sshll.u32 [#allocation7], 4
      %s43 = int_to_ptr.vmem [resolvable:$true] %s42
      %48 = dma.hbm_to_vmem [thread:$0]  %s41, 2048, %s43, [#allocation6], 128, 128, 8
    $region13: #{tpu_custom_call.1} parent=1 // pred_fallthru
      _
    // Predicated region
    $region14: #{tpu_custom_call.1} parent=1 // pred_check
      _
    $region15: #{tpu_custom_call.1} parent=1 // pred_check_branch
      %50 = sbr.rel (0) target = $region17
    $region16: #{tpu_custom_call.1} parent=1 // pred_region
      _
    $region17: #{tpu_custom_call.1} parent=1 // pred_fallthru
      _
    // Predicated region
    $region18: #{tpu_custom_call.1} parent=1 // pred_check
      _
    $region19: #{tpu_custom_call.1} parent=1 // pred_check_branch
      %52 = sbr.rel (0) target = $region21
    $region20: #{tpu_custom_call.1} parent=1 // pred_region
      %54 = dma.done [#allocation3], 128
    $region21: #{tpu_custom_call.1} parent=1 // pred_fallthru
      _
    // Predicated region
    $region22: #{tpu_custom_call.1} parent=1 // pred_check
      _
    $region23: #{tpu_custom_call.1} parent=1 // pred_check_branch
      %56 = sbr.rel (0) target = $region25
    $region24: #{tpu_custom_call.1} parent=1 // pred_region
      %58 = dma.done [#allocation6], 16
    $region25: #{tpu_custom_call.1} parent=1 // pred_fallthru
      _
    // Predicated region
    $region26: #{tpu_custom_call.1} parent=1 // pred_check
      _
    $region27: #{tpu_custom_call.1} parent=1 // pred_check_branch
      %60 = sbr.rel (0) target = $region29
    $region28: #{tpu_custom_call.1} parent=1 // pred_region
      %62 = dma.done [#allocation6], 2048
    $region29: #{tpu_custom_call.1} parent=1 // pred_fallthru
      _
    %v63 = vlaneseq
    %v64 = vand.u32 %v63, 127
    %vm65 = vcmp.ge.s32.totalorder %v64, 14
    %vm66 = vcmp.lt.s32.totalorder %v64, 22
    %vm67 = vmand %vm65, %vm66
    %vm68 = vcmp.ge.s32.totalorder %v64, 22
    %vm69 = vcmp.lt.s32.totalorder %v64, 37
    %vm70 = vmand %vm68, %vm69
    %v71 = vld [vmem:[#allocation7] sm:$0xff]
    %v72 = vld [vmem:[#allocation7 + $0x8] sm:$0xff]
    %v73 = vld [vmem:[#allocation7 + $0x10] sm:$0xff]
    %v74 = vld [vmem:[#allocation7 + $0x18] sm:$0xff]
    %v75 = vld [vmem:[#allocation7 + $0x20] sm:$0xff]
    %v76 = vld [vmem:[#allocation7 + $0x28] sm:$0xff]
    %v77 = vld [vmem:[#allocation7 + $0x30] sm:$0xff]
    %v78 = vld [vmem:[#allocation7 + $0x38] sm:$0xff]
    %v79 = vld [vmem:[#allocation7 + $0x40] sm:$0xff]
    %v80 = vld [vmem:[#allocation7 + $0x48] sm:$0xff]
    %v81 = vld [vmem:[#allocation7 + $0x50] sm:$0xff]
    %v82 = vld [vmem:[#allocation7 + $0x58] sm:$0xff]
    %v83 = vld [vmem:[#allocation7 + $0x60] sm:$0xff]
    %v84 = vld [vmem:[#allocation7 + $0x68] sm:$0xff]
    %v85 = vld [vmem:[#allocation7 + $0x70] sm:$0xff]
    %v86 = vld [vmem:[#allocation7 + $0x78] sm:$0xff]
    %v87 = vld [vmem:[%s3] sm:$0x1]
    %v88 = vld [vmem:[#allocation5] sm:$0x1]
    %v89 = vld [vmem:[#allocation2] sm:$0x1]
    %v90 = vadd.f32 %v89, %v88
    %91 = vmatpush.msra.mxu0 %v86
    %92 = vmatpush.msra.mxu0 %v85
    %93 = vmatpush.msra.mxu0 %v84
    %94 = vmatpush.msra.mxu0 %v83
    %95 = vmatpush.msra.mxu0 %v82
    %96 = vmatpush.msra.mxu0 %v81
    %97 = vmatpush.msra.mxu0 %v80
    %98 = vmatpush.msra.mxu0 %v79
    %99 = vmatpush.msra.mxu0 %v78
    %100 = vmatpush.msra.mxu0 %v77
    %101 = vmatpush.msra.mxu0 %v76
    %102 = vmatpush.msra.mxu0 %v75
    %103 = vmatpush.msra.mxu0 %v74
    %104 = vmatpush.msra.mxu0 %v73
    %105 = vmatpush.msra.mxu0 %v72
    %106 = vmatpush.msra.mxu0 %v71
    %107 = vmatmul.f32.gmra.mxu0 %v90
    %v108 = vpop.f32.mrf.mxu0
    %v109 = vadd.f32 %v87, %v108
    %110 = vdwg.mxu0
    %v111 = vsel %vm67, %v109, 0.0
    %v112 = vsel %vm70, %v109, -inf
    %vm113 = vcmask 1040384
    %v114 = vsel %vm113, %v112, -inf
    %115 = vmax.xlane.f32.xlu0 %v114
    %v116 = vpop.xlane.xlu0 %115
    %v117 = vsub.f32 %v112, %v116
    %v118 = vmul.f32 %v117, 1.442695
    %v119 = vpow.pop %v118
    %v120 = vsel %vm113, %v119, 0.0
    %121 = vadd.xlane.f32.xlu0 %v120
    %v122 = vpop.xlane.xlu0 %121
    %v123 = vlog2.pop %v122
    %v124 = vmul.f32 %v123, 0.6931472
    %v125 = vsub.f32 %v117, %v124
    %v126 = vsel %vm70, %v125, 0.0
    %v127 = vsel %vm67, %v109, %v126
    %s128 = scalar_lea.vmem [#allocation2], 1
    %v129 = vld [vmem:[%s128] sm:$0x1]
    %v130 = vadd.f32 %v129, %v111
    %131 = vmatpush.msra.mxu0 %v86
    %132 = vmatpush.msra.mxu0 %v85
    %133 = vmatpush.msra.mxu0 %v84
    %134 = vmatpush.msra.mxu0 %v83
    %135 = vmatpush.msra.mxu0 %v82
    %136 = vmatpush.msra.mxu0 %v81
    %137 = vmatpush.msra.mxu0 %v80
    %138 = vmatpush.msra.mxu0 %v79
    %139 = vmatpush.msra.mxu0 %v78
    %140 = vmatpush.msra.mxu0 %v77
    %141 = vmatpush.msra.mxu0 %v76
    %142 = vmatpush.msra.mxu0 %v75
    %143 = vmatpush.msra.mxu0 %v74
    %144 = vmatpush.msra.mxu0 %v73
    %145 = vmatpush.msra.mxu0 %v72
    %146 = vmatpush.msra.mxu0 %v71
    %147 = vmatmul.f32.gmra.mxu0 %v130
    %v148 = vpop.f32.mrf.mxu0
    %v149 = vadd.f32 %v87, %v148
    %150 = vdwg.mxu0
    %v151 = vsel %vm67, %v149, 0.0
    %v152 = vsel %vm70, %v149, -inf
    %v153 = vsel %vm113, %v152, -inf
    %154 = vmax.xlane.f32.xlu0 %v153
    %v155 = vpop.xlane.xlu0 %154
    %v156 = vsub.f32 %v152, %v155
    %v157 = vmul.f32 %v156, 1.442695
    %v158 = vpow.pop %v157
    %v159 = vsel %vm113, %v158, 0.0
    %160 = vadd.xlane.f32.xlu0 %v159
    %v161 = vpop.xlane.xlu0 %160
    %v162 = vlog2.pop %v161
    %v163 = vmul.f32 %v162, 0.6931472
    %v164 = vsub.f32 %v156, %v163
    %v165 = vsel %vm70, %v164, 0.0
    %v166 = vsel %vm67, %v149, %v165
    %s167 = scalar_lea.vmem [#allocation2], 2
    %v168 = vld [vmem:[%s167] sm:$0x1]
    %v169 = vadd.f32 %v168, %v151
    %170 = vmatpush.msra.mxu0 %v86
    %171 = vmatpush.msra.mxu0 %v85
    %172 = vmatpush.msra.mxu0 %v84
    %173 = vmatpush.msra.mxu0 %v83
    %174 = vmatpush.msra.mxu0 %v82
    %175 = vmatpush.msra.mxu0 %v81
    %176 = vmatpush.msra.mxu0 %v80
    %177 = vmatpush.msra.mxu0 %v79
    %178 = vmatpush.msra.mxu0 %v78
    %179 = vmatpush.msra.mxu0 %v77
    %180 = vmatpush.msra.mxu0 %v76
    %181 = vmatpush.msra.mxu0 %v75
    %182 = vmatpush.msra.mxu0 %v74
    %183 = vmatpush.msra.mxu0 %v73
    %184 = vmatpush.msra.mxu0 %v72
    %185 = vmatpush.msra.mxu0 %v71
    %186 = vmatmul.f32.gmra.mxu0 %v169
    %v187 = vpop.f32.mrf.mxu0
    %v188 = vadd.f32 %v87, %v187
    %189 = vdwg.mxu0
    %v190 = vsel %vm67, %v188, 0.0
    %v191 = vsel %vm70, %v188, -inf
    %v192 = vsel %vm113, %v191, -inf
    %193 = vmax.xlane.f32.xlu0 %v192
    %v194 = vpop.xlane.xlu0 %193
    %v195 = vsub.f32 %v191, %v194
    %v196 = vmul.f32 %v195, 1.442695
    %v197 = vpow.pop %v196
    %v198 = vsel %vm113, %v197, 0.0
    %199 = vadd.xlane.f32.xlu0 %v198
    %v200 = vpop.xlane.xlu0 %199
    %v201 = vlog2.pop %v200
    %v202 = vmul.f32 %v201, 0.6931472
    %v203 = vsub.f32 %v195, %v202
    %v204 = vsel %vm70, %v203, 0.0
    %v205 = vsel %vm67, %v188, %v204
    %s206 = scalar_lea.vmem [#allocation2], 3
    %v207 = vld [vmem:[%s206] sm:$0x1]
    %v208 = vadd.f32 %v207, %v190
    %209 = vmatpush.msra.mxu0 %v86
    %210 = vmatpush.msra.mxu0 %v85
    %211 = vmatpush.msra.mxu0 %v84
    %212 = vmatpush.msra.mxu0 %v83
    %213 = vmatpush.msra.mxu0 %v82
    %214 = vmatpush.msra.mxu0 %v81
    %215 = vmatpush.msra.mxu0 %v80
    %216 = vmatpush.msra.mxu0 %v79
    %217 = vmatpush.msra.mxu0 %v78
    %218 = vmatpush.msra.mxu0 %v77
    %219 = vmatpush.msra.mxu0 %v76
    %220 = vmatpush.msra.mxu0 %v75
    %221 = vmatpush.msra.mxu0 %v74
    %222 = vmatpush.msra.mxu0 %v73
    %223 = vmatpush.msra.mxu0 %v72
    %224 = vmatpush.msra.mxu0 %v71
    %225 = vmatmul.f32.gmra.mxu0 %v208
    %v226 = vpop.f32.mrf.mxu0
    %v227 = vadd.f32 %v87, %v226
    %228 = vdwg.mxu0
    %v229 = vsel %vm67, %v227, 0.0
    %v230 = vsel %vm70, %v227, -inf
    %v231 = vsel %vm113, %v230, -inf
    %232 = vmax.xlane.f32.xlu0 %v231
    %v233 = vpop.xlane.xlu0 %232
    %v234 = vsub.f32 %v230, %v233
    %v235 = vmul.f32 %v234, 1.442695
    %v236 = vpow.pop %v235
    %v237 = vsel %vm113, %v236, 0.0
    %238 = vadd.xlane.f32.xlu0 %v237
    %v239 = vpop.xlane.xlu0 %238
    %v240 = vlog2.pop %v239
    %v241 = vmul.f32 %v240, 0.6931472
    %v242 = vsub.f32 %v234, %v241
    %v243 = vsel %vm70, %v242, 0.0
    %v244 = vsel %vm67, %v227, %v243
    %s245 = scalar_lea.vmem [#allocation2], 4
    %v246 = vld [vmem:[%s245] sm:$0x1]
    %v247 = vadd.f32 %v246, %v229
    %248 = vmatpush.msra.mxu0 %v86
    %249 = vmatpush.msra.mxu0 %v85
    %250 = vmatpush.msra.mxu0 %v84
    %251 = vmatpush.msra.mxu0 %v83
    %252 = vmatpush.msra.mxu0 %v82
    %253 = vmatpush.msra.mxu0 %v81
    %254 = vmatpush.msra.mxu0 %v80
    %255 = vmatpush.msra.mxu0 %v79
    %256 = vmatpush.msra.mxu0 %v78
    %257 = vmatpush.msra.mxu0 %v77
    %258 = vmatpush.msra.mxu0 %v76
    %259 = vmatpush.msra.mxu0 %v75
    %260 = vmatpush.msra.mxu0 %v74
    %261 = vmatpush.msra.mxu0 %v73
    %262 = vmatpush.msra.mxu0 %v72
    %263 = vmatpush.msra.mxu0 %v71
    %264 = vmatmul.f32.gmra.mxu0 %v247
    %v265 = vpop.f32.mrf.mxu0
    %v266 = vadd.f32 %v87, %v265
    %267 = vdwg.mxu0
    %v268 = vsel %vm67, %v266, 0.0
    %v269 = vsel %vm70, %v266, -inf
    %v270 = vsel %vm113, %v269, -inf
    %271 = vmax.xlane.f32.xlu0 %v270
    %v272 = vpop.xlane.xlu0 %271
    %v273 = vsub.f32 %v269, %v272
    %v274 = vmul.f32 %v273, 1.442695
    %v275 = vpow.pop %v274
    %v276 = vsel %vm113, %v275, 0.0
    %277 = vadd.xlane.f32.xlu0 %v276
    %v278 = vpop.xlane.xlu0 %277
    %v279 = vlog2.pop %v278
    %v280 = vmul.f32 %v279, 0.6931472
    %v281 = vsub.f32 %v273, %v280
    %v282 = vsel %vm70, %v281, 0.0
    %v283 = vsel %vm67, %v266, %v282
    %s284 = scalar_lea.vmem [#allocation2], 5
    %v285 = vld [vmem:[%s284] sm:$0x1]
    %v286 = vadd.f32 %v285, %v268
    %287 = vmatpush.msra.mxu0 %v86
    %288 = vmatpush.msra.mxu0 %v85
    %289 = vmatpush.msra.mxu0 %v84
    %290 = vmatpush.msra.mxu0 %v83
    %291 = vmatpush.msra.mxu0 %v82
    %292 = vmatpush.msra.mxu0 %v81
    %293 = vmatpush.msra.mxu0 %v80
    %294 = vmatpush.msra.mxu0 %v79
    %295 = vmatpush.msra.mxu0 %v78
    %296 = vmatpush.msra.mxu0 %v77
    %297 = vmatpush.msra.mxu0 %v76
    %298 = vmatpush.msra.mxu0 %v75
    %299 = vmatpush.msra.mxu0 %v74
    %300 = vmatpush.msra.mxu0 %v73
    %301 = vmatpush.msra.mxu0 %v72
    %302 = vmatpush.msra.mxu0 %v71
    %303 = vmatmul.f32.gmra.mxu0 %v286
    %v304 = vpop.f32.mrf.mxu0
    %v305 = vadd.f32 %v87, %v304
    %306 = vdwg.mxu0
    %v307 = vsel %vm67, %v305, 0.0
    %v308 = vsel %vm70, %v305, -inf
    %v309 = vsel %vm113, %v308, -inf
    %310 = vmax.xlane.f32.xlu0 %v309
    %v311 = vpop.xlane.xlu0 %310
    %v312 = vsub.f32 %v308, %v311
    %v313 = vmul.f32 %v312, 1.442695
    %v314 = vpow.pop %v313
    %v315 = vsel %vm113, %v314, 0.0
    %316 = vadd.xlane.f32.xlu0 %v315
    %v317 = vpop.xlane.xlu0 %316
    %v318 = vlog2.pop %v317
    %v319 = vmul.f32 %v318, 0.6931472
    %v320 = vsub.f32 %v312, %v319
    %v321 = vsel %vm70, %v320, 0.0
    %v322 = vsel %vm67, %v305, %v321
    %s323 = scalar_lea.vmem [#allocation2], 6
    %v324 = vld [vmem:[%s323] sm:$0x1]
    %v325 = vadd.f32 %v324, %v307
    %326 = vmatpush.msra.mxu0 %v86
    %327 = vmatpush.msra.mxu0 %v85
    %328 = vmatpush.msra.mxu0 %v84
    %329 = vmatpush.msra.mxu0 %v83
    %330 = vmatpush.msra.mxu0 %v82
    %331 = vmatpush.msra.mxu0 %v81
    %332 = vmatpush.msra.mxu0 %v80
    %333 = vmatpush.msra.mxu0 %v79
    %334 = vmatpush.msra.mxu0 %v78
    %335 = vmatpush.msra.mxu0 %v77
    %336 = vmatpush.msra.mxu0 %v76
    %337 = vmatpush.msra.mxu0 %v75
    %338 = vmatpush.msra.mxu0 %v74
    %339 = vmatpush.msra.mxu0 %v73
    %340 = vmatpush.msra.mxu0 %v72
    %341 = vmatpush.msra.mxu0 %v71
    %342 = vmatmul.f32.gmra.mxu0 %v325
    %v343 = vpop.f32.mrf.mxu0
    %v344 = vadd.f32 %v87, %v343
    %345 = vdwg.mxu0
    %v346 = vsel %vm67, %v344, 0.0
    %v347 = vsel %vm70, %v344, -inf
    %v348 = vsel %vm113, %v347, -inf
    %349 = vmax.xlane.f32.xlu0 %v348
    %v350 = vpop.xlane.xlu0 %349
    %v351 = vsub.f32 %v347, %v350
    %v352 = vmul.f32 %v351, 1.442695
    %v353 = vpow.pop %v352
    %v354 = vsel %vm113, %v353, 0.0
    %355 = vadd.xlane.f32.xlu0 %v354
    %v356 = vpop.xlane.xlu0 %355
    %v357 = vlog2.pop %v356
    %v358 = vmul.f32 %v357, 0.6931472
    %v359 = vsub.f32 %v351, %v358
    %v360 = vsel %vm70, %v359, 0.0
    %v361 = vsel %vm67, %v344, %v360
    %s362 = scalar_lea.vmem [#allocation2], 7
    %v363 = vld [vmem:[%s362] sm:$0x1]
    %v364 = vadd.f32 %v363, %v346
    %365 = vmatpush.msra.mxu0 %v86
    %366 = vmatpush.msra.mxu0 %v85
    %367 = vmatpush.msra.mxu0 %v84
    %368 = vmatpush.msra.mxu0 %v83
    %369 = vmatpush.msra.mxu0 %v82
    %370 = vmatpush.msra.mxu0 %v81
    %371 = vmatpush.msra.mxu0 %v80
    %372 = vmatpush.msra.mxu0 %v79
    %373 = vmatpush.msra.mxu0 %v78
    %374 = vmatpush.msra.mxu0 %v77
    %375 = vmatpush.msra.mxu0 %v76
    %376 = vmatpush.msra.mxu0 %v75
    %377 = vmatpush.msra.mxu0 %v74
    %378 = vmatpush.msra.mxu0 %v73
    %379 = vmatpush.msra.mxu0 %v72
    %380 = vmatpush.msra.mxu0 %v71
    %381 = vmatmul.f32.gmra.mxu0 %v364
    %v382 = vpop.f32.mrf.mxu0
    %v383 = vadd.f32 %v87, %v382
    %384 = vdwg.mxu0
    %v385 = vsel %vm70, %v383, -inf
    %v386 = vsel %vm113, %v385, -inf
    %387 = vmax.xlane.f32.xlu0 %v386
    %v388 = vpop.xlane.xlu0 %387
    %v389 = vsub.f32 %v385, %v388
    %v390 = vmul.f32 %v389, 1.442695
    %v391 = vpow.pop %v390
    %v392 = vsel %vm113, %v391, 0.0
    %393 = vadd.xlane.f32.xlu0 %v392
    %v394 = vpop.xlane.xlu0 %393
    %v395 = vlog2.pop %v394
    %v396 = vmul.f32 %v395, 0.6931472
    %v397 = vsub.f32 %v389, %v396
    %v398 = vsel %vm70, %v397, 0.0
    %v399 = vsel %vm67, %v383, %v398
    %v401 = vrot.slane %v166, 7
    %v404 = vrot.slane %v205, 6
    %v407 = vrot.slane %v244, 5
    %v410 = vrot.slane %v283, 4
    %v413 = vrot.slane %v322, 3
    %v416 = vrot.slane %v361, 2
    %v419 = vrot.slane %v399, 1
    %v421 = vsel %vm113, %v127, %v401
    %vm422 = vcmask 1041408
    %v423 = vsel %vm422, %v421, %v404
    %vm424 = vcmask 1042432
    %v425 = vsel %vm424, %v423, %v407
    %vm426 = vcmask 1043456
    %v427 = vsel %vm426, %v425, %v410
    %vm428 = vcmask 1044480
    %v429 = vsel %vm428, %v427, %v413
    %vm430 = vcmask 1045504
    %v431 = vsel %vm430, %v429, %v416
    %vm432 = vcmask 1046528
    %v433 = vsel %vm432, %v431, %v419
    %434 = vst [vmem:[#allocation8] sm:$0xff] %v433
    // Predicated region
    $region30: #{tpu_custom_call.1} parent=1 // pred_check
      _
    $region31: #{tpu_custom_call.1} parent=1 // pred_check_branch
      %436 = sbr.rel (0) target = $region33
    $region32: #{tpu_custom_call.1} parent=1 // pred_region
      %438 = vsyncadd [#allocation4], 0
      %s440 = sshll.u32 [#allocation8], 4
      %s441 = int_to_ptr.vmem [resolvable:$true] %s440
      %s442 = sshll.u32 %s4, 4
      %s443 = int_to_ptr.hbm [resolvable:$true] %s442
      %445 = dma.vmem_to_hbm [thread:$0]  %s441, 128, %s443, [#allocation4]
    $region33: #{tpu_custom_call.1} parent=1 // pred_fallthru
      _
    // Predicated region
    $region34: #{tpu_custom_call.1} parent=1 // pred_check
      _
    $region35: #{tpu_custom_call.1} parent=1 // pred_check_branch
      %447 = sbr.rel (0) target = $region37
    $region36: #{tpu_custom_call.1} parent=1 // pred_region
      %449 = dma.done [#allocation4], 128
    $region37: #{tpu_custom_call.1} parent=1 // pred_fallthru
      _
    %450 = vsyncpa [#allocation3], 1
    %451 = vsyncpa [#allocation6], 1
    %452 = vsyncpa [#allocation4], 1

</llo_original>
